<compile_context>
chip_gen: v6e
topology: v6e:2x2x1
jax: 0.10.0
libtpu: 0.0.40
codegen_flags: <defaults>
</compile_context>

<pallas_src>
import jax
import jax.numpy as jnp
from jax.experimental import pallas as pl
from jax.experimental.pallas import tpu as pltpu


def actnorm_kernel(scale_ref, bias_ref, h_ref, o_ref):
    # scale_ref, bias_ref: (1, C, 1)   (replicated across the grid)
    # h_ref, o_ref       : (Bblk, C, tT)
    o_ref[...] = ((h_ref[...] + bias_ref[...]) * scale_ref[...]).astype(o_ref.dtype)


def _choose_tiles(B, C, T, itemsize, block_budget_bytes=8 * 1024 * 1024):
    """Pick (Bblk, tT) so double-buffered in+out blocks stay within budget.

    Budget is conservative (8 MiB for all live blocks) so it fits the default
    scoped VMEM limit on v5e/v6e/v7x without needing vmem_limit_bytes.
    """
    # Lane-dense T tile (multiple of 128), or the full extent for small T.
    if T <= 512:
        tT = T
    else:
        max_tt = max(128, block_budget_bytes // (4 * C * itemsize))
        tT = min(T, min(4096, (max_tt // 128) * 128))
    # Pack batch rows per grid step while blocks stay within budget.
    # Helps a lot when C is small (few sublanes): fewer, larger DMAs and
    # fewer ~600-cycle per-step overheads.
    bblk = 1
    while (bblk < B and B % (2 * bblk) == 0
           and 4 * (2 * bblk) * C * tT * itemsize <= block_budget_bytes):
        bblk *= 2
    return bblk, tT


def actnorm_forward(h, m, logs):
    """ActNorm forward. h: (B, C, T); m, logs: (1, C, 1). Returns (out, logdet)."""
    B, C, T = h.shape
    itemsize = jnp.dtype(h.dtype).itemsize
    bblk, tT = _choose_tiles(B, C, T, itemsize)

    # Tiny (C,) parameter glue in plain JAX; cast to h.dtype for native VPU path.
    scale = jnp.exp(logs).astype(h.dtype)   # (1, C, 1)
    bias = m.astype(h.dtype)                # (1, C, 1)

    grid = (B // bblk, pl.cdiv(T, tT))

    out = pl.pallas_call(
        actnorm_kernel,
        out_shape=jax.ShapeDtypeStruct((B, C, T), h.dtype),
        grid_spec=pltpu.PrefetchScalarGridSpec(
            num_scalar_prefetch=0,
            grid=grid,
            in_specs=[
                pl.BlockSpec((1, C, 1), lambda b, t: (0, 0, 0)),       # scale
                pl.BlockSpec((1, C, 1), lambda b, t: (0, 0, 0)),       # bias
                pl.BlockSpec((bblk, C, tT), lambda b, t: (b, 0, t)),   # h tile
            ],
            out_specs=pl.BlockSpec((bblk, C, tT), lambda b, t: (b, 0, t)),
        ),
        compiler_params=pltpu.CompilerParams(
            dimension_semantics=("parallel", "parallel"),
        ),
        cost_estimate=pl.CostEstimate(
            flops=2 * B * C * T,
            transcendentals=0,
            bytes_accessed=2 * B * C * T * itemsize,
        ),
    )(scale, bias, h)

    # Constant scalar: keep it out of the kernel (perf review item #1).
    logdet = jnp.sum(logs) * T
    return out, logdet


def actnorm_data_init(h, eps=1e-7):
    """Data-dependent init of (m, logs), matching ActNorm.forward's init branch.

    Tiny per-channel reductions; done in plain JAX (not worth a kernel).
    """
    # TODO(synk): the PyTorch module mutates its parameters in place and flips an
    # `initialized` flag; that statefulness has no Pallas equivalent, so init is
    # exposed as this separate pure function.
    B, C, T = h.shape
    flat = jnp.transpose(h, (1, 0, 2)).reshape(C, -1)
    mean = flat.mean(axis=1)
    std = flat.std(axis=1, ddof=1)              # torch.std default is unbiased
    m = (-mean).reshape(1, C, 1).astype(jnp.float32)
    logs = jnp.log(1.0 / (std + eps)).reshape(1, C, 1).astype(jnp.float32)
    return m, logs


if __name__ == "__main__":
    B, C, T = 2, 4, 16
    key = jax.random.PRNGKey(0)
    h = jax.random.normal(key, (B, C, T), dtype=jnp.float32)

    # data_init=True path: the first forward call initializes m/logs from data.
    m, logs = actnorm_data_init(h)

    out, logdet = actnorm_forward(h, m, logs)
    out = jax.block_until_ready(out)
    logdet = jax.block_until_ready(logdet)

    # Reference in plain JAX.
    out_ref = jnp.exp(logs) * (h + m)
    logdet_ref = jnp.sum(logs) * T
    assert jnp.allclose(out, out_ref, atol=1e-5, rtol=1e-5)
    assert jnp.allclose(logdet, logdet_ref, atol=1e-5, rtol=1e-5)

    print("KERNEL_OK")
</pallas_src>

<mosaic_0001>
module attributes {stable_mosaic.version = 11 : i64} {
  func.func @actnorm_kernel(%arg0: i32, %arg1: i32, %arg2: memref<1x4x1xf32, #tpu.memory_space<vmem>>, %arg3: memref<1x4x1xf32, #tpu.memory_space<vmem>>, %arg4: memref<2x4x16xf32, #tpu.memory_space<vmem>>, %arg5: memref<2x4x16xf32, #tpu.memory_space<vmem>>) attributes {dimension_semantics = [#tpu.dimension_semantics<parallel>, #tpu.dimension_semantics<parallel>], iteration_bounds = array<i64: 1, 1>, scalar_prefetch = 0 : i64, scratch_operands = 0 : i64, tpu.core_type = #tpu.core_type<tc>, window_params = [{pipeline_mode = #tpu.pipeline_mode<synchronous>, transform_indices = @transform_0, window_bounds = array<i64: 1, 4, 1>}, {pipeline_mode = #tpu.pipeline_mode<synchronous>, transform_indices = @transform_1, window_bounds = array<i64: 1, 4, 1>}, {transform_indices = @transform_2, window_bounds = array<i64: 2, 4, 16>}, {transform_indices = @transform_3, window_bounds = array<i64: 2, 4, 16>}]} {
    %c0 = arith.constant 0 : index
    %c0_0 = arith.constant 0 : index
    %c0_1 = arith.constant 0 : index
    %0 = vector.load %arg4[%c0, %c0_0, %c0_1] : memref<2x4x16xf32, #tpu.memory_space<vmem>>, vector<2x4x16xf32>
    %c0_2 = arith.constant 0 : index
    %c0_3 = arith.constant 0 : index
    %c0_4 = arith.constant 0 : index
    %1 = vector.load %arg3[%c0_2, %c0_3, %c0_4] : memref<1x4x1xf32, #tpu.memory_space<vmem>>, vector<1x4x1xf32>
    %2 = vector.broadcast %1 : vector<1x4x1xf32> to vector<2x4x16xf32>
    %3 = arith.addf %0, %2 : vector<2x4x16xf32>
    %c0_5 = arith.constant 0 : index
    %c0_6 = arith.constant 0 : index
    %c0_7 = arith.constant 0 : index
    %4 = vector.load %arg2[%c0_5, %c0_6, %c0_7] : memref<1x4x1xf32, #tpu.memory_space<vmem>>, vector<1x4x1xf32>
    %5 = vector.broadcast %4 : vector<1x4x1xf32> to vector<2x4x16xf32>
    %6 = arith.mulf %3, %5 : vector<2x4x16xf32>
    %c0_8 = arith.constant 0 : index
    %c0_9 = arith.constant 0 : index
    %c0_10 = arith.constant 0 : index
    %7 = vector.load %arg5[%c0_8, %c0_9, %c0_10] : memref<2x4x16xf32, #tpu.memory_space<vmem>>, vector<2x4x16xf32>
    tpu.vector_store %arg5[%c0_8, %c0_9, %c0_10], %6 {strides = array<i32>} : memref<2x4x16xf32, #tpu.memory_space<vmem>>, vector<2x4x16xf32>,
    return
  }
  func.func @transform_0(%arg0: i32, %arg1: i32) -> (i32, i32, i32) {
    %c0_i32 = arith.constant 0 : i32
    %c0_i32_0 = arith.constant 0 : i32
    %c0_i32_1 = arith.constant 0 : i32
    %c0_i32_2 = arith.constant 0 : i32
    return %c0_i32, %c0_i32_0, %c0_i32_1 : i32, i32, i32
  }
  func.func @transform_1(%arg0: i32, %arg1: i32) -> (i32, i32, i32) {
    %c0_i32 = arith.constant 0 : i32
    %c0_i32_0 = arith.constant 0 : i32
    %c0_i32_1 = arith.constant 0 : i32
    %c0_i32_2 = arith.constant 0 : i32
    return %c0_i32, %c0_i32_0, %c0_i32_1 : i32, i32, i32
  }
  func.func @transform_2(%arg0: i32, %arg1: i32) -> (i32, i32, i32) {
    %c0_i32 = arith.constant 0 : i32
    %c0_i32_0 = arith.constant 0 : i32
    return %arg0, %c0_i32, %arg1 : i32, i32, i32
  }
  func.func @transform_3(%arg0: i32, %arg1: i32) -> (i32, i32, i32) {
    %c0_i32 = arith.constant 0 : i32
    %c0_i32_0 = arith.constant 0 : i32
    return %arg0, %c0_i32, %arg1 : i32, i32, i32
  }
}

</mosaic_0001>

<llo_original>
// kernel: tpu_custom_call.1
$region0: #{tpu_custom_call.1}
  #allocation0 [shape = 'u32[]', space=smem, size = 0x4, offset = 0x4, fixed_abs, tag = 'smem constant byte address 0x4 - core index']
  #allocation1 [shape = 'u32[144,128]{1,0:T(1,128)}', space=vmem, size = 0x12000, scoped, tag = 'internal scratch']
  %s0 = inlined_call_operand.vmem [shape: f32[1,4,1], index: 0, kind: input, shape index: {}]
  %s1 = inlined_call_operand.vmem [shape: f32[1,4,1], index: 1, kind: input, shape index: {}]
  %s2 = inlined_call_operand.vmem [shape: f32[2,4,16], index: 2, kind: input, shape index: {}]
  %s3 = inlined_call_operand.hbm [shape: f32[2,4,16], index: 3, kind: output, shape index: {}]
  %s4 = sld [smem:[#allocation0]]
  $region22: #{tpu_custom_call.1} parent=0
    _
  %s6 = ssub.s32 1, %s4
  %s7 = scalar_select 0, %s6, %s4
  $region1: #{tpu_custom_call.1} parent=0
    #allocation2 [shape = 'u8[4096]{0}', space=vmem, size = 0x1000, scoped, tag = 'output window, operand 0, single buffered']
    #allocation3 [shape = 's32[1]{0}', space=sflag, size = 0x4, scoped, tag = 'scoped memory for tpu_custom_call.1']
    %8 = vsyncpa [#allocation3], 0
    // Predicated region
    $region2: #{tpu_custom_call.1} parent=1 // pred_check
      _
    $region3: #{tpu_custom_call.1} parent=1 // pred_check_branch
      %10 = sbr.rel (0) target = $region5
    $region4: #{tpu_custom_call.1} parent=1 // pred_region
      _
    $region5: #{tpu_custom_call.1} parent=1 // pred_fallthru
      _
    // Predicated region
    $region6: #{tpu_custom_call.1} parent=1 // pred_check
      _
    $region7: #{tpu_custom_call.1} parent=1 // pred_check_branch
      %12 = sbr.rel (0) target = $region9
    $region8: #{tpu_custom_call.1} parent=1 // pred_region
      _
    $region9: #{tpu_custom_call.1} parent=1 // pred_fallthru
      _
    // Predicated region
    $region10: #{tpu_custom_call.1} parent=1 // pred_check
      _
    $region11: #{tpu_custom_call.1} parent=1 // pred_check_branch
      %14 = sbr.rel (0) target = $region13
    $region12: #{tpu_custom_call.1} parent=1 // pred_region
      _
    $region13: #{tpu_custom_call.1} parent=1 // pred_fallthru
      _
    %v15 = vld [vmem:[%s2] sm:$0xf]
    %v16 = vld [vmem:[%s2 + $0x4] sm:$0xf]
    %v17 = vld [vmem:[%s1] sm:$0xf]
    %19 = vset.pattern.permute.xlu0 0
    %20 = vperm.xlu0 %19, %v17
    %v21 = vpop.permute.xlu0 %20
    %v23 = vadd.f32 %v15, %v21
    %v24 = vadd.f32 %v16, %v21
    %v25 = vld [vmem:[%s0] sm:$0xf]
    %27 = vset.pattern.permute.xlu0 0
    %28 = vperm.xlu0 %27, %v25
    %v29 = vpop.permute.xlu0 %28
    %v31 = vmul.f32 %v23, %v29
    %v32 = vmul.f32 %v24, %v29
    %vm33 = vcmask 125952
    %34 = vst.msk [vmem:[#allocation2] sm:$0xf] %vm33, %v31
    %35 = vst.msk [vmem:[#allocation2 + $0x4] sm:$0xf] %vm33, %v32
    // Predicated region
    $region14: #{tpu_custom_call.1} parent=1 // pred_check
      _
    $region15: #{tpu_custom_call.1} parent=1 // pred_check_branch
      %37 = sbr.rel (0) target = $region17
    $region16: #{tpu_custom_call.1} parent=1 // pred_region
      %s39 = ssub.s32 128, 128
      %40 = vsyncadd [#allocation3], %s39
      %s41 = sshll.u32 [#allocation2], 4
      %s42 = int_to_ptr.vmem [resolvable:$true] %s41
      %47 = dma.vmem_to_hbm [thread:$0]  %s42, 128, %s3, [#allocation3], 64, 64, 4
    $region17: #{tpu_custom_call.1} parent=1 // pred_fallthru
      _
    // Predicated region
    $region18: #{tpu_custom_call.1} parent=1 // pred_check
      _
    $region19: #{tpu_custom_call.1} parent=1 // pred_check_branch
      %49 = sbr.rel (0) target = $region21
    $region20: #{tpu_custom_call.1} parent=1 // pred_region
      %50 = dma.done [#allocation3], 128
    $region21: #{tpu_custom_call.1} parent=1 // pred_fallthru
      _
    %51 = vsyncpa [#allocation3], 1

</llo_original>
